<compile_context>
chip_gen: v7x
topology: tpu7x:2x2x1
jax: 0.10.0
libtpu: 0.0.40
codegen_flags: <defaults>
</compile_context>

<pallas_src>
import functools

import jax
import jax.numpy as jnp
from jax.experimental import pallas as pl
from jax.experimental.pallas import tpu as pltpu


# ---------------------------------------------------------------------------
# Kernel
# ---------------------------------------------------------------------------
def _mixture_policy_kernel(
    x_ref, w1_ref, b1_ref, w2_ref, b2_ref, wh_ref, bh_ref, out_ref
):
    # hidden MLP (Linear -> ReLU -> Linear -> ReLU), f32 accumulation on MXU,
    # bias/ReLU in f32 (portable to v5e which has no bf16 VPU).
    x = x_ref[...]
    h = jnp.dot(x, w1_ref[...], preferred_element_type=jnp.float32)
    h = jnp.maximum(h + b1_ref[...], 0.0)
    h = jnp.dot(h.astype(w2_ref.dtype), w2_ref[...],
                preferred_element_type=jnp.float32)
    h = jnp.maximum(h + b2_ref[...], 0.0)
    # single fused head matmul over the lane-padded [mu | ln_scale | logit_prob]
    # slab -> one unmasked, lane-dense store.
    out_ref[...] = (
        jnp.dot(h.astype(wh_ref.dtype), wh_ref[...],
                preferred_element_type=jnp.float32)
        + bh_ref[...]
    )


def _round_up(n, m):
    return ((n + m - 1) // m) * m


# ---------------------------------------------------------------------------
# Wrapper around pallas_call
# ---------------------------------------------------------------------------
def mixture_policy_heads(x, params, *, compute_dtype=jnp.bfloat16,
                         block_rows=512):
    """Fused MLP + 3 linear heads.  Returns (mu, ln_scale, logit_prob), each
    of shape (TB, out_dim * n_mixtures) in float32."""
    TB, in_dim = x.shape
    hidden = params["w1"].shape[1]
    head_out = params["wmu"].shape[1]          # out_dim * n_mixtures

    # --- pack the 3 heads into one lane-dense weight slab -------------------
    # Column layout: [0:H) = mu, [H:2H) = ln_scale, [2H:3H) = logit_prob.
    # Reshape to (out_dim, n_mixtures) afterwards matches PyTorch's
    # Linear(hidden, out_dim*n_mixtures).reshape(..., out_dim, n_mixtures)
    # because we generate the columns with identical (d*n_mixtures + m) order.
    w_heads = jnp.concatenate(
        [params["wmu"], params["wls"], params["wlp"]], axis=1)
    b_heads = jnp.concatenate(
        [params["bmu"].reshape(1, -1),
         params["bls"].reshape(1, -1),
         params["blp"].reshape(1, -1)], axis=1)
    slab = 3 * head_out
    slab_pad = _round_up(slab, 128)            # lane-dense output (unmasked vst)
    w_heads = jnp.pad(w_heads, ((0, 0), (0, slab_pad - slab)))
    b_heads = jnp.pad(b_heads, ((0, 0), (0, slab_pad - slab)))

    # --- row tiling ----------------------------------------------------------
    tm = min(block_rows, _round_up(TB, 8))     # sublane-aligned row tile
    tb_pad = _round_up(TB, tm)
    x_p = jnp.pad(x, ((0, tb_pad - TB), (0, 0)))

    # matmul operands in bf16 (MXU-native); biases stay f32.
    x_c = x_p.astype(compute_dtype)
    w1 = params["w1"].astype(compute_dtype)
    w2 = params["w2"].astype(compute_dtype)
    wh = w_heads.astype(compute_dtype)
    b1 = params["b1"].reshape(1, -1).astype(jnp.float32)
    b2 = params["b2"].reshape(1, -1).astype(jnp.float32)
    bh = b_heads.astype(jnp.float32)

    grid = (pl.cdiv(tb_pad, tm),)

    # --- VMEM budget (weights resident + double-buffered x/out blocks) ------
    itm = jnp.dtype(compute_dtype).itemsize
    weight_bytes = (in_dim * hidden + hidden * hidden + hidden * slab_pad) * itm
    bias_bytes = (hidden + hidden + slab_pad) * 4
    x_blk_bytes = 2 * tm * in_dim * itm
    out_blk_bytes = 2 * tm * slab_pad * 4
    h_bytes = 2 * tm * hidden * 4
    est = 2 * (weight_bytes + bias_bytes) + x_blk_bytes + out_blk_bytes + h_bytes
    vmem_limit = int(min(max(4 * est, 8 << 20), 64 << 20))

    out = pl.pallas_call(
        _mixture_policy_kernel,
        grid=grid,
        in_specs=[
            pl.BlockSpec((tm, in_dim), lambda i: (i, 0)),       # x: streamed
            pl.BlockSpec((in_dim, hidden), lambda i: (0, 0)),   # W1: resident
            pl.BlockSpec((1, hidden), lambda i: (0, 0)),        # b1
            pl.BlockSpec((hidden, hidden), lambda i: (0, 0)),   # W2
            pl.BlockSpec((1, hidden), lambda i: (0, 0)),        # b2
            pl.BlockSpec((hidden, slab_pad), lambda i: (0, 0)), # W_heads
            pl.BlockSpec((1, slab_pad), lambda i: (0, 0)),      # b_heads
        ],
        out_specs=pl.BlockSpec((tm, slab_pad), lambda i: (i, 0)),
        out_shape=jax.ShapeDtypeStruct((tb_pad, slab_pad), jnp.float32),
        compiler_params=pltpu.CompilerParams(
            dimension_semantics=("parallel",),   # shards rows across v7x's 2 TCs
            vmem_limit_bytes=vmem_limit,
        ),
    )(x_c, w1, b1, w2, b2, wh, bh)

    mu = out[:TB, 0:head_out]
    ln_scale = out[:TB, head_out:2 * head_out]
    logit_prob = out[:TB, 2 * head_out:3 * head_out]
    return mu, ln_scale, logit_prob


# ---------------------------------------------------------------------------
# Parameter init (PyTorch-Linear-like scaling), weights as (fan_in, fan_out)
# ---------------------------------------------------------------------------
def init_params(key, in_dim, hidden_dim, out_dim, n_mixtures):
    ks = jax.random.split(key, 10)

    def linear(kw, kb, fan_in, fan_out):
        bound = 1.0 / jnp.sqrt(float(fan_in))
        w = jax.random.uniform(kw, (fan_in, fan_out), jnp.float32, -bound, bound)
        b = jax.random.uniform(kb, (1, fan_out), jnp.float32, -bound, bound)
        return w, b

    head = out_dim * n_mixtures
    w1, b1 = linear(ks[0], ks[1], in_dim, hidden_dim)
    w2, b2 = linear(ks[2], ks[3], hidden_dim, hidden_dim)
    wmu, bmu = linear(ks[4], ks[5], hidden_dim, head)
    wls, bls = linear(ks[6], ks[7], hidden_dim, head)
    wlp, blp = linear(ks[8], ks[9], hidden_dim, head)
    return dict(
        w1=w1, b1=b1, w2=w2, b2=b2,
        wmu=wmu, bmu=bmu, wls=wls, bls=bls, wlp=wlp, blp=blp,
    )


# ---------------------------------------------------------------------------
# Full forward (equivalent of MixturePolicyNet.forward, deterministic=False)
# Implements the hidden_dim>0, const_var=False, n_mixtures>1 configuration.
# TODO(synk): const_var=True (learned per-dim ln_scale parameter) and
#             n_mixtures==1 (logit_prob = ones_like(mu)) variants are not
#             wired into the fused kernel.
# ---------------------------------------------------------------------------
@functools.partial(jax.jit, static_argnames=("out_dim", "n_mixtures"))
def mixture_policy_forward(core_output, params, sample_key, *, out_dim, n_mixtures):
    T, B, in_dim = core_output.shape
    x = core_output.reshape(T * B, in_dim)

    mu_flat, ls_flat, lp_flat = mixture_policy_heads(x, params)

    mu = mu_flat.reshape(T * B, out_dim, n_mixtures)
    ln_scale = ls_flat.reshape(T * B, out_dim, n_mixtures)
    logit_prob = lp_flat.reshape(T * B, out_dim, n_mixtures)

    # TODO(synk): the concrete action distribution class (__Distribution__) is
    # external; we rsample a per-dimension mixture of Gaussians (categorical
    # over mixture logits, Gaussian with std=exp(ln_scale)), the usual
    # GMM-policy-head semantics.  exp() is applied only to the gathered
    # (TB, out_dim) components, so it is cheaper outside the kernel.
    k_comp, k_eps = jax.random.split(sample_key)
    comp = jax.random.categorical(k_comp, logit_prob, axis=-1)        # (TB, out_dim)
    eps = jax.random.normal(k_eps, (T * B, out_dim), jnp.float32)
    mu_sel = jnp.take_along_axis(mu, comp[..., None], axis=-1)[..., 0]
    sc_sel = jnp.exp(jnp.take_along_axis(ln_scale, comp[..., None], axis=-1)[..., 0])
    action = (mu_sel + sc_sel * eps).reshape(T, B, out_dim)

    policy_logits_tuple = tuple(
        a.reshape(T, B, out_dim, n_mixtures) for a in (mu, ln_scale, logit_prob)
    )
    return policy_logits_tuple, action


# ---------------------------------------------------------------------------
# Pure-JAX reference for the heads (same bf16 weight casts, f32 accumulation)
# ---------------------------------------------------------------------------
def _reference_heads(x, params, compute_dtype=jnp.bfloat16):
    cd = compute_dtype
    h = jnp.dot(x.astype(cd), params["w1"].astype(cd),
                preferred_element_type=jnp.float32) + params["b1"]
    h = jnp.maximum(h, 0.0)
    h = jnp.dot(h.astype(cd), params["w2"].astype(cd),
                preferred_element_type=jnp.float32) + params["b2"]
    h = jnp.maximum(h, 0.0)

    def head(w, b):
        return jnp.dot(h.astype(cd), w.astype(cd),
                       preferred_element_type=jnp.float32) + b

    return (head(params["wmu"], params["bmu"]),
            head(params["wls"], params["bls"]),
            head(params["wlp"], params["blp"]))


if __name__ == "__main__":
    # Small shapes consistent with the module's forward (T, B, in_dim).
    T, B = 2, 4
    in_dim, hidden_dim = 32, 32
    out_dim, n_mixtures = 4, 3

    key = jax.random.PRNGKey(0)
    k_params, k_input, k_sample = jax.random.split(key, 3)

    params = init_params(k_params, in_dim, hidden_dim, out_dim, n_mixtures)
    core_output = jax.random.normal(k_input, (T, B, in_dim), jnp.float32)

    (mu, ln_scale, logit_prob), action = mixture_policy_forward(
        core_output, params, k_sample, out_dim=out_dim, n_mixtures=n_mixtures
    )
    jax.block_until_ready((mu, ln_scale, logit_prob, action))

    assert mu.shape == (T, B, out_dim, n_mixtures)
    assert ln_scale.shape == (T, B, out_dim, n_mixtures)
    assert logit_prob.shape == (T, B, out_dim, n_mixtures)
    assert action.shape == (T, B, out_dim)

    # Numerics check vs. a pure-JAX reference using identical bf16 casts.
    x_flat = core_output.reshape(T * B, in_dim)
    mu_k, ls_k, lp_k = jax.jit(mixture_policy_heads)(x_flat, params)
    mu_r, ls_r, lp_r = jax.jit(_reference_heads)(x_flat, params)
    for a, b in ((mu_k, mu_r), (ls_k, ls_r), (lp_k, lp_r)):
        assert jnp.allclose(a, b, rtol=1e-2, atol=1e-2), "head mismatch vs reference"

    print("KERNEL_OK")
</pallas_src>

<mosaic_0001>
module attributes {stable_mosaic.version = 11 : i64} {
  func.func @_mixture_policy_kernel(%arg0: i32, %arg1: memref<8x32xbf16, #tpu.memory_space<vmem>>, %arg2: memref<32x32xbf16, #tpu.memory_space<vmem>>, %arg3: memref<1x32xf32, #tpu.memory_space<vmem>>, %arg4: memref<32x32xbf16, #tpu.memory_space<vmem>>, %arg5: memref<1x32xf32, #tpu.memory_space<vmem>>, %arg6: memref<32x128xbf16, #tpu.memory_space<vmem>>, %arg7: memref<1x128xf32, #tpu.memory_space<vmem>>, %arg8: memref<8x128xf32, #tpu.memory_space<vmem>>) attributes {dimension_semantics = [#tpu.dimension_semantics<parallel>], iteration_bounds = array<i64: 1>, scalar_prefetch = 0 : i64, scratch_operands = 0 : i64, tpu.core_type = #tpu.core_type<tc>, window_params = [{transform_indices = @transform_0, window_bounds = array<i64: 8, 32>}, {pipeline_mode = #tpu.pipeline_mode<synchronous>, transform_indices = @transform_1, window_bounds = array<i64: 32, 32>}, {pipeline_mode = #tpu.pipeline_mode<synchronous>, transform_indices = @transform_2, window_bounds = array<i64: 1, 32>}, {pipeline_mode = #tpu.pipeline_mode<synchronous>, transform_indices = @transform_3, window_bounds = array<i64: 32, 32>}, {pipeline_mode = #tpu.pipeline_mode<synchronous>, transform_indices = @transform_4, window_bounds = array<i64: 1, 32>}, {pipeline_mode = #tpu.pipeline_mode<synchronous>, transform_indices = @transform_5, window_bounds = array<i64: 32, 128>}, {pipeline_mode = #tpu.pipeline_mode<synchronous>, transform_indices = @transform_6, window_bounds = array<i64: 1, 128>}, {transform_indices = @transform_7, window_bounds = array<i64: 8, 128>}]} {
    %c0 = arith.constant 0 : index
    %c0_0 = arith.constant 0 : index
    %0 = vector.load %arg1[%c0, %c0_0] : memref<8x32xbf16, #tpu.memory_space<vmem>>, vector<8x32xbf16>
    %c0_1 = arith.constant 0 : index
    %c0_2 = arith.constant 0 : index
    %1 = vector.load %arg2[%c0_1, %c0_2] : memref<32x32xbf16, #tpu.memory_space<vmem>>, vector<32x32xbf16>
    %cst = arith.constant dense<0.000000e+00> : vector<8x32xf32>
    %2 = tpu.matmul %0, %1, %cst {dimension_numbers = #tpu.dot_dimension_numbers<[1], [0], [0], [1], [0, 0, 1, 1], [], []>} : vector<8x32xbf16>, vector<32x32xbf16>, vector<8x32xf32> -> vector<8x32xf32>
    %c0_3 = arith.constant 0 : index
    %c0_4 = arith.constant 0 : index
    %3 = vector.load %arg3[%c0_3, %c0_4] : memref<1x32xf32, #tpu.memory_space<vmem>>, vector<1x32xf32>
    %4 = vector.broadcast %3 : vector<1x32xf32> to vector<8x32xf32>
    %5 = arith.addf %2, %4 : vector<8x32xf32>
    %cst_5 = arith.constant 0.000000e+00 : f32
    %6 = vector.broadcast %cst_5 : f32 to vector<8x32xf32>
    %7 = arith.maximumf %5, %6 : vector<8x32xf32>
    %8 = arith.truncf %7 : vector<8x32xf32> to vector<8x32xbf16>
    %c0_6 = arith.constant 0 : index
    %c0_7 = arith.constant 0 : index
    %9 = vector.load %arg4[%c0_6, %c0_7] : memref<32x32xbf16, #tpu.memory_space<vmem>>, vector<32x32xbf16>
    %cst_8 = arith.constant dense<0.000000e+00> : vector<8x32xf32>
    %10 = tpu.matmul %8, %9, %cst_8 {dimension_numbers = #tpu.dot_dimension_numbers<[1], [0], [0], [1], [0, 0, 1, 1], [], []>} : vector<8x32xbf16>, vector<32x32xbf16>, vector<8x32xf32> -> vector<8x32xf32>
    %c0_9 = arith.constant 0 : index
    %c0_10 = arith.constant 0 : index
    %11 = vector.load %arg5[%c0_9, %c0_10] : memref<1x32xf32, #tpu.memory_space<vmem>>, vector<1x32xf32>
    %12 = vector.broadcast %11 : vector<1x32xf32> to vector<8x32xf32>
    %13 = arith.addf %10, %12 : vector<8x32xf32>
    %cst_11 = arith.constant 0.000000e+00 : f32
    %14 = vector.broadcast %cst_11 : f32 to vector<8x32xf32>
    %15 = arith.maximumf %13, %14 : vector<8x32xf32>
    %16 = arith.truncf %15 : vector<8x32xf32> to vector<8x32xbf16>
    %c0_12 = arith.constant 0 : index
    %c0_13 = arith.constant 0 : index
    %17 = vector.load %arg6[%c0_12, %c0_13] : memref<32x128xbf16, #tpu.memory_space<vmem>>, vector<32x128xbf16>
    %cst_14 = arith.constant dense<0.000000e+00> : vector<8x128xf32>
    %18 = tpu.matmul %16, %17, %cst_14 {dimension_numbers = #tpu.dot_dimension_numbers<[1], [0], [0], [1], [0, 0, 1, 1], [], []>} : vector<8x32xbf16>, vector<32x128xbf16>, vector<8x128xf32> -> vector<8x128xf32>
    %c0_15 = arith.constant 0 : index
    %c0_16 = arith.constant 0 : index
    %19 = vector.load %arg7[%c0_15, %c0_16] : memref<1x128xf32, #tpu.memory_space<vmem>>, vector<1x128xf32>
    %20 = vector.broadcast %19 : vector<1x128xf32> to vector<8x128xf32>
    %21 = arith.addf %18, %20 : vector<8x128xf32>
    %c0_17 = arith.constant 0 : index
    %c0_18 = arith.constant 0 : index
    %22 = vector.load %arg8[%c0_17, %c0_18] : memref<8x128xf32, #tpu.memory_space<vmem>>, vector<8x128xf32>
    tpu.vector_store %arg8[%c0_17, %c0_18], %21 {strides = array<i32>} : memref<8x128xf32, #tpu.memory_space<vmem>>, vector<8x128xf32>,
    return
  }
  func.func @transform_0(%arg0: i32) -> (i32, i32) {
    %c0_i32 = arith.constant 0 : i32
    %c0_i32_0 = arith.constant 0 : i32
    return %arg0, %c0_i32 : i32, i32
  }
  func.func @transform_1(%arg0: i32) -> (i32, i32) {
    %c0_i32 = arith.constant 0 : i32
    %c0_i32_0 = arith.constant 0 : i32
    %c0_i32_1 = arith.constant 0 : i32
    return %c0_i32, %c0_i32_0 : i32, i32
  }
  func.func @transform_2(%arg0: i32) -> (i32, i32) {
    %c0_i32 = arith.constant 0 : i32
    %c0_i32_0 = arith.constant 0 : i32
    %c0_i32_1 = arith.constant 0 : i32
    return %c0_i32, %c0_i32_0 : i32, i32
  }
  func.func @transform_3(%arg0: i32) -> (i32, i32) {
    %c0_i32 = arith.constant 0 : i32
    %c0_i32_0 = arith.constant 0 : i32
    %c0_i32_1 = arith.constant 0 : i32
    return %c0_i32, %c0_i32_0 : i32, i32
  }
  func.func @transform_4(%arg0: i32) -> (i32, i32) {
    %c0_i32 = arith.constant 0 : i32
    %c0_i32_0 = arith.constant 0 : i32
    %c0_i32_1 = arith.constant 0 : i32
    return %c0_i32, %c0_i32_0 : i32, i32
  }
  func.func @transform_5(%arg0: i32) -> (i32, i32) {
    %c0_i32 = arith.constant 0 : i32
    %c0_i32_0 = arith.constant 0 : i32
    %c0_i32_1 = arith.constant 0 : i32
    return %c0_i32, %c0_i32_0 : i32, i32
  }
  func.func @transform_6(%arg0: i32) -> (i32, i32) {
    %c0_i32 = arith.constant 0 : i32
    %c0_i32_0 = arith.constant 0 : i32
    %c0_i32_1 = arith.constant 0 : i32
    return %c0_i32, %c0_i32_0 : i32, i32
  }
  func.func @transform_7(%arg0: i32) -> (i32, i32) {
    %c0_i32 = arith.constant 0 : i32
    %c0_i32_0 = arith.constant 0 : i32
    return %arg0, %c0_i32 : i32, i32
  }
}

</mosaic_0001>

<llo_original>
// kernel: mixture_policy_forward.3
$region0: #{mixture_policy_forward.3}
  #allocation0 [shape = 'u32[]', space=smem, size = 0x4, offset = 0x4, fixed_abs, tag = 'smem constant byte address 0x4 - core index']
  #allocation1 [shape = 'u32[144,128]{1,0:T(1,128)}', space=vmem, size = 0x12000, scoped, tag = 'internal scratch']
  %s0 = inlined_call_operand.vmem [shape: bf16[8,32], index: 0, kind: input, shape index: {}]
  %s1 = inlined_call_operand.vmem [shape: bf16[32,32], index: 1, kind: input, shape index: {}]
  %s2 = inlined_call_operand.vmem [shape: f32[1,32], index: 2, kind: input, shape index: {}]
  %s3 = inlined_call_operand.vmem [shape: bf16[32,32], index: 3, kind: input, shape index: {}]
  %s4 = inlined_call_operand.vmem [shape: f32[1,32], index: 4, kind: input, shape index: {}]
  %s5 = inlined_call_operand.vmem [shape: bf16[32,128], index: 5, kind: input, shape index: {}]
  %s6 = inlined_call_operand.vmem [shape: f32[1,128], index: 6, kind: input, shape index: {}]
  %s7 = inlined_call_operand.vmem [shape: f32[8,128], index: 7, kind: output, shape index: {}]
  %s8 = sld [smem:[#allocation0]]
  $region38: #{mixture_policy_forward.3} parent=0
    _
  %s10 = ssub.s32 1, %s8
  %s11 = scalar_select 0, %s10, %s8
  // Predicated region
  $region2: #{mixture_policy_forward.3} parent=0 // pred_check
    _
  $region3: #{mixture_policy_forward.3} parent=0 // pred_check_branch
    %13 = sbr.rel (0) target = $region5
  $region4: #{mixture_policy_forward.3} parent=0 // pred_region
    _
  $region5: #{mixture_policy_forward.3} parent=0 // pred_fallthru
    _
  // Predicated region
  $region6: #{mixture_policy_forward.3} parent=0 // pred_check
    _
  $region7: #{mixture_policy_forward.3} parent=0 // pred_check_branch
    %15 = sbr.rel (0) target = $region9
  $region8: #{mixture_policy_forward.3} parent=0 // pred_region
    _
  $region9: #{mixture_policy_forward.3} parent=0 // pred_fallthru
    _
  // Predicated region
  $region10: #{mixture_policy_forward.3} parent=0 // pred_check
    _
  $region11: #{mixture_policy_forward.3} parent=0 // pred_check_branch
    %17 = sbr.rel (0) target = $region13
  $region12: #{mixture_policy_forward.3} parent=0 // pred_region
    _
  $region13: #{mixture_policy_forward.3} parent=0 // pred_fallthru
    _
  // Predicated region
  $region14: #{mixture_policy_forward.3} parent=0 // pred_check
    _
  $region15: #{mixture_policy_forward.3} parent=0 // pred_check_branch
    %19 = sbr.rel (0) target = $region17
  $region16: #{mixture_policy_forward.3} parent=0 // pred_region
    _
  $region17: #{mixture_policy_forward.3} parent=0 // pred_fallthru
    _
  // Predicated region
  $region18: #{mixture_policy_forward.3} parent=0 // pred_check
    _
  $region19: #{mixture_policy_forward.3} parent=0 // pred_check_branch
    %21 = sbr.rel (0) target = $region21
  $region20: #{mixture_policy_forward.3} parent=0 // pred_region
    _
  $region21: #{mixture_policy_forward.3} parent=0 // pred_fallthru
    _
  // Predicated region
  $region22: #{mixture_policy_forward.3} parent=0 // pred_check
    _
  $region23: #{mixture_policy_forward.3} parent=0 // pred_check_branch
    %23 = sbr.rel (0) target = $region25
  $region24: #{mixture_policy_forward.3} parent=0 // pred_region
    _
  $region25: #{mixture_policy_forward.3} parent=0 // pred_fallthru
    _
  // Predicated region
  $region26: #{mixture_policy_forward.3} parent=0 // pred_check
    _
  $region27: #{mixture_policy_forward.3} parent=0 // pred_check_branch
    %25 = sbr.rel (0) target = $region29
  $region28: #{mixture_policy_forward.3} parent=0 // pred_region
    _
  $region29: #{mixture_policy_forward.3} parent=0 // pred_fallthru
    _
  %v27 = vld [vmem:[%s0] sm:$0xf]
  %v28 = vld [vmem:[%s1] sm:$0xf]
  %v29 = vld [vmem:[%s1 + $0x4] sm:$0xf]
  %v30 = vld [vmem:[%s1 + $0x8] sm:$0xf]
  %v31 = vld [vmem:[%s1 + $0xc] sm:$0xf]
  %v32 = vld [vmem:[%s2] sm:$0x1]
  %v34 = vlaneseq
  %v35 = vshrl.u32 %v34, 7
  %v36 = vsub.s32 0, %v35
  %v37 = vrot.slane %v32, %v36
  %v43 = vunpack.c.l.b16 %v28
  %v44 = vunpack.c.l.b16 %v29
  %v45 = vunpack.c.l.b16 %v30
  %v46 = vunpack.c.l.b16 %v31
  %v47 = vpack.c.b16 %v44, %v43
  %v48 = vpack.c.b16 %v46, %v45
  %vm51 = vcmask 261120
  %v53 = vsel %vm51, %v27, 0
  %55 = vmatprep.subr.bf16.mxu0 0
  %56 = vmatpush1.bf16.msra.mxu0 %v47
  %57 = vmatprep.subr.bf16.mxu0 0
  %58 = vmatpush1.bf16.msra.mxu0 %v48
  %59 = vmatprep.subr.bf16.mxu0 0
  %60 = vmatpush1.bf16.msra.mxu0 0
  %61 = vmatprep.subr.bf16.mxu0 0
  %62 = vmatpush1.bf16.msra.mxu0 0
  %63 = vmatprep.subr.bf16.mxu0 0
  %64 = vmatpush1.bf16.msra.mxu0 0
  %65 = vmatprep.subr.bf16.mxu0 0
  %66 = vmatpush1.bf16.msra.mxu0 0
  %67 = vmatprep.subr.bf16.mxu0 0
  %68 = vmatpush1.bf16.msra.mxu0 0
  %69 = vmatprep.subr.bf16.mxu0 0
  %70 = vmatpush1.bf16.msra.mxu0 0
  %71 = vmatprep.subr.bf16.mxu0 0
  %72 = vmatpush1.bf16.msra.mxu0 0
  %73 = vmatprep.subr.bf16.mxu0 0
  %74 = vmatpush1.bf16.msra.mxu0 0
  %75 = vmatprep.subr.bf16.mxu0 0
  %76 = vmatpush1.bf16.msra.mxu0 0
  %77 = vmatprep.subr.bf16.mxu0 0
  %78 = vmatpush1.bf16.msra.mxu0 0
  %79 = vmatprep.subr.bf16.mxu0 0
  %80 = vmatpush1.bf16.msra.mxu0 0
  %81 = vmatprep.subr.bf16.mxu0 0
  %82 = vmatpush1.bf16.msra.mxu0 0
  %83 = vmatprep.subr.bf16.mxu0 0
  %84 = vmatpush1.bf16.msra.mxu0 0
  %85 = vmatprep.subr.bf16.mxu0 0
  %86 = vmatpush1.bf16.msra.mxu0 0
  %87 = vmatprep.mubr.bf16.mxu0 0
  %88 = vmatmul.mubr.bf16.gmra.mrb[0].mxu0 %v53
  %v89 = vpop.f32.mrb[0].mxu0
  %v90 = vadd.f32 %v37, %v89
  %v91 = vpop.f32.mrb[0].mxu0
  %v92 = vpop.f32.mrb[0].mxu0
  %v93 = vpop.f32.mrb[0].mxu0
  %94 = vdwg.mxu0
  %v95 = vmax.f32 %v90, 0.0
  %v96 = vpack.c.bf16 %v95, %v95
  %v97 = vld [vmem:[%s3] sm:$0xf]
  %v98 = vld [vmem:[%s3 + $0x4] sm:$0xf]
  %v99 = vld [vmem:[%s3 + $0x8] sm:$0xf]
  %v100 = vld [vmem:[%s3 + $0xc] sm:$0xf]
  %v101 = vld [vmem:[%s4] sm:$0x1]
  %v103 = vlaneseq
  %v104 = vshrl.u32 %v103, 7
  %v105 = vsub.s32 0, %v104
  %v106 = vrot.slane %v101, %v105
  %v112 = vunpack.c.l.b16 %v97
  %v113 = vunpack.c.l.b16 %v98
  %v114 = vunpack.c.l.b16 %v99
  %v115 = vunpack.c.l.b16 %v100
  %v116 = vpack.c.b16 %v113, %v112
  %v117 = vpack.c.b16 %v115, %v114
  %v121 = vsel %vm51, %v96, 0
  %123 = vmatprep.subr.bf16.mxu0 0
  %124 = vmatpush1.bf16.msra.mxu0 %v116
  %125 = vmatprep.subr.bf16.mxu0 0
  %126 = vmatpush1.bf16.msra.mxu0 %v117
  %127 = vmatprep.subr.bf16.mxu0 0
  %128 = vmatpush1.bf16.msra.mxu0 0
  %129 = vmatprep.subr.bf16.mxu0 0
  %130 = vmatpush1.bf16.msra.mxu0 0
  %131 = vmatprep.subr.bf16.mxu0 0
  %132 = vmatpush1.bf16.msra.mxu0 0
  %133 = vmatprep.subr.bf16.mxu0 0
  %134 = vmatpush1.bf16.msra.mxu0 0
  %135 = vmatprep.subr.bf16.mxu0 0
  %136 = vmatpush1.bf16.msra.mxu0 0
  %137 = vmatprep.subr.bf16.mxu0 0
  %138 = vmatpush1.bf16.msra.mxu0 0
  %139 = vmatprep.subr.bf16.mxu0 0
  %140 = vmatpush1.bf16.msra.mxu0 0
  %141 = vmatprep.subr.bf16.mxu0 0
  %142 = vmatpush1.bf16.msra.mxu0 0
  %143 = vmatprep.subr.bf16.mxu0 0
  %144 = vmatpush1.bf16.msra.mxu0 0
  %145 = vmatprep.subr.bf16.mxu0 0
  %146 = vmatpush1.bf16.msra.mxu0 0
  %147 = vmatprep.subr.bf16.mxu0 0
  %148 = vmatpush1.bf16.msra.mxu0 0
  %149 = vmatprep.subr.bf16.mxu0 0
  %150 = vmatpush1.bf16.msra.mxu0 0
  %151 = vmatprep.subr.bf16.mxu0 0
  %152 = vmatpush1.bf16.msra.mxu0 0
  %153 = vmatprep.subr.bf16.mxu0 0
  %154 = vmatpush1.bf16.msra.mxu0 0
  %155 = vmatprep.mubr.bf16.mxu0 0
  %156 = vmatmul.mubr.bf16.gmra.mrb[0].mxu0 %v121
  %v157 = vpop.f32.mrb[0].mxu0
  %v158 = vadd.f32 %v106, %v157
  %v159 = vpop.f32.mrb[0].mxu0
  %v160 = vpop.f32.mrb[0].mxu0
  %v161 = vpop.f32.mrb[0].mxu0
  %162 = vdwg.mxu0
  %v163 = vmax.f32 %v158, 0.0
  %v164 = vpack.c.bf16 %v163, %v163
  %v165 = vld [vmem:[%s5] sm:$0xf]
  %v166 = vld [vmem:[%s5 + $0x4] sm:$0xf]
  %v167 = vld [vmem:[%s5 + $0x8] sm:$0xf]
  %v168 = vld [vmem:[%s5 + $0xc] sm:$0xf]
  %v169 = vld [vmem:[%s6] sm:$0x1]
  %v171 = vlaneseq
  %v172 = vshrl.u32 %v171, 7
  %v173 = vsub.s32 0, %v172
  %v174 = vrot.slane %v169, %v173
  %v180 = vunpack.c.l.b16 %v165
  %v181 = vunpack.c.l.b16 %v166
  %v182 = vunpack.c.l.b16 %v167
  %v183 = vunpack.c.l.b16 %v168
  %v184 = vpack.c.b16 %v181, %v180
  %v185 = vpack.c.b16 %v183, %v182
  %v189 = vsel %vm51, %v164, 0
  %191 = vmatprep.subr.bf16.mxu0 0
  %192 = vmatpush1.bf16.msra.mxu0 %v184
  %193 = vmatprep.subr.bf16.mxu0 0
  %194 = vmatpush1.bf16.msra.mxu0 %v185
  %195 = vmatprep.subr.bf16.mxu0 0
  %196 = vmatpush1.bf16.msra.mxu0 0
  %197 = vmatprep.subr.bf16.mxu0 0
  %198 = vmatpush1.bf16.msra.mxu0 0
  %199 = vmatprep.subr.bf16.mxu0 0
  %200 = vmatpush1.bf16.msra.mxu0 0
  %201 = vmatprep.subr.bf16.mxu0 0
  %202 = vmatpush1.bf16.msra.mxu0 0
  %203 = vmatprep.subr.bf16.mxu0 0
  %204 = vmatpush1.bf16.msra.mxu0 0
  %205 = vmatprep.subr.bf16.mxu0 0
  %206 = vmatpush1.bf16.msra.mxu0 0
  %207 = vmatprep.subr.bf16.mxu0 0
  %208 = vmatpush1.bf16.msra.mxu0 0
  %209 = vmatprep.subr.bf16.mxu0 0
  %210 = vmatpush1.bf16.msra.mxu0 0
  %211 = vmatprep.subr.bf16.mxu0 0
  %212 = vmatpush1.bf16.msra.mxu0 0
  %213 = vmatprep.subr.bf16.mxu0 0
  %214 = vmatpush1.bf16.msra.mxu0 0
  %215 = vmatprep.subr.bf16.mxu0 0
  %216 = vmatpush1.bf16.msra.mxu0 0
  %217 = vmatprep.subr.bf16.mxu0 0
  %218 = vmatpush1.bf16.msra.mxu0 0
  %219 = vmatprep.subr.bf16.mxu0 0
  %220 = vmatpush1.bf16.msra.mxu0 0
  %221 = vmatprep.subr.bf16.mxu0 0
  %222 = vmatpush1.bf16.msra.mxu0 0
  %223 = vmatprep.mubr.bf16.mxu0 0
  %224 = vmatmul.mubr.bf16.gmra.mrb[0].mxu0 %v189
  %v225 = vpop.f32.mrb[0].mxu0
  %v226 = vadd.f32 %v174, %v225
  %v227 = vpop.f32.mrb[0].mxu0
  %v228 = vpop.f32.mrb[0].mxu0
  %v229 = vpop.f32.mrb[0].mxu0
  %230 = vdwg.mxu0
  %231 = vst [vmem:[%s7] sm:$0xff] %v226
  // Predicated region
  $region30: #{mixture_policy_forward.3} parent=0 // pred_check
    _
  $region31: #{mixture_policy_forward.3} parent=0 // pred_check_branch
    %233 = sbr.rel (0) target = $region33
  $region32: #{mixture_policy_forward.3} parent=0 // pred_region
    _
  $region33: #{mixture_policy_forward.3} parent=0 // pred_fallthru
    _
  // Predicated region
  $region34: #{mixture_policy_forward.3} parent=0 // pred_check
    _
  $region35: #{mixture_policy_forward.3} parent=0 // pred_check_branch
    %235 = sbr.rel (0) target = $region37
  $region36: #{mixture_policy_forward.3} parent=0 // pred_region
    _
  $region37: #{mixture_policy_forward.3} parent=0 // pred_fallthru
    _

</llo_original>
